<compile_context>
chip_gen: v6e
topology: v6e:2x2x1
jax: 0.10.0
libtpu: 0.0.40
codegen_flags: <defaults>
</compile_context>

<pallas_src>
import jax
import jax.numpy as jnp
from jax.experimental import pallas as pl
from jax.experimental.pallas import tpu as pltpu

INPUT_SIZE = 1
LAYER_SIZE = 15
OUTPUT_SIZE = 1

# Packed-parameter layout (single SMEM-resident array of 64 f32 scalars):
#   [ 0:15]  e_j = 0.5 * w2_j * |w1_j|
#   [16:31]  g_j = b1_j / w1_j            (0 where w1_j == 0)
#   [32]     A   = 0.5 * sum_j w2_j*w1_j
#   [33]     C   = b2 + 0.5*sum_{w1!=0} w2_j*b1_j + sum_{w1==0} w2_j*relu(b1_j)
_E_OFF, _G_OFF, _A_OFF, _C_OFF = 0, 16, 32, 33
_PARAM_LEN = 64

LANE_TILE = 1024          # lanes per tile (multiple of 128)
BLOCK_ROWS = 256          # sublane rows per grid step on the big path -> 1 MiB/operand
CHUNK_ROWS = 8            # in-kernel chunk = one (8, lane) vreg row group
FAST_PATH_BYTES = 4 * 1024 * 1024   # <= 4 MiB of input -> single block, grid=(1,)


def _round_up(n, m):
    return ((n + m - 1) // m) * m


def mlp_kernel(p_ref, x_ref, o_ref):
    """p_ref: SMEM (64,) f32 packed params (resident across the grid).
    x_ref/o_ref: VMEM (block_rows, lane_tile) f32 batch tiles."""
    # Hoist every SMEM scalar read once, above the chunk loop.
    a = p_ref[_A_OFF]
    c = p_ref[_C_OFF]
    e = [p_ref[_E_OFF + j] for j in range(LAYER_SIZE)]
    g = [p_ref[_G_OFF + j] for j in range(LAYER_SIZE)]

    n_chunks = x_ref.shape[0] // CHUNK_ROWS  # static (block shape is static)

    def compute_chunk(r):
        x = x_ref[pl.ds(r, CHUNK_ROWS), :]
        acc = a * x + c
        for j in range(LAYER_SIZE):               # static unroll, 15 terms
            acc = acc + e[j] * jnp.abs(x + g[j])  # add, abs, fma -> pure VPU
        o_ref[pl.ds(r, CHUNK_ROWS), :] = acc

    if n_chunks == 1:
        compute_chunk(0)
    else:
        def body(ci, carry):
            compute_chunk(pl.multiple_of(ci * CHUNK_ROWS, CHUNK_ROWS))
            return carry
        jax.lax.fori_loop(0, n_chunks, body, 0)


def _pack_params(w1, b1, w2, b2):
    """Fold the two Linear layers + ReLU into the abs-form constants."""
    w1 = w1.reshape(-1).astype(jnp.float32)   # (15,)
    b1 = b1.reshape(-1).astype(jnp.float32)   # (15,)
    w2 = w2.reshape(-1).astype(jnp.float32)   # (15,)
    b2s = b2.reshape(-1).astype(jnp.float32)[0]

    nz = w1 != 0.0
    e = jnp.where(nz, 0.5 * w2 * jnp.abs(w1), 0.0)
    g = jnp.where(nz, b1 / jnp.where(nz, w1, 1.0), 0.0)
    a = 0.5 * jnp.sum(w2 * w1)
    c = b2s + jnp.sum(jnp.where(nz, 0.5 * w2 * b1, w2 * jnp.maximum(b1, 0.0)))

    p = jnp.zeros((_PARAM_LEN,), jnp.float32)
    p = p.at[_E_OFF:_E_OFF + LAYER_SIZE].set(e)
    p = p.at[_G_OFF:_G_OFF + LAYER_SIZE].set(g)
    p = p.at[_A_OFF].set(a)
    p = p.at[_C_OFF].set(c)
    return p


def neural_network_forward(x, w1, b1, w2, b2):
    """x: (B, 1) f32.  w1: (15, 1), b1: (15,), w2: (1, 15), b2: (1,) — PyTorch
    nn.Linear parameter shapes.  Returns (B, 1) f32 == layer2(relu(layer1(x)))."""
    B = x.shape[0]
    params = _pack_params(w1, b1, w2, b2)
    xf = x.reshape(-1).astype(jnp.float32)

    if B * 4 <= FAST_PATH_BYTES:
        # Single full-array block, grid=(1,): launch-dominated floor.
        lt = min(LANE_TILE, _round_up(pl.cdiv(B, CHUNK_ROWS), 128))
        rows = _round_up(pl.cdiv(B, lt), CHUNK_ROWS)
        block_rows = rows
        grid = (1,)
    else:
        # Big path: (256, 1024) f32 tiles (~1 MiB/operand), pipelined grid.
        lt = LANE_TILE
        block_rows = BLOCK_ROWS
        # Pad only up to an (8 * lane_tile) multiple (<=32 KiB of pad); the
        # ragged last 256-row block is masked by Pallas edge handling, so we
        # never pad the whole batch up to a block multiple.
        rows = _round_up(pl.cdiv(B, lt), CHUNK_ROWS)
        grid = (pl.cdiv(rows, block_rows),)

    padded = rows * lt
    if padded != B:
        # TODO(synk): for very large unaligned B this pad is still a full HBM
        # copy; a ragged in-kernel tail would remove it entirely.
        xf = jnp.pad(xf, (0, padded - B))
    x2 = xf.reshape(rows, lt)

    out2 = pl.pallas_call(
        mlp_kernel,
        out_shape=jax.ShapeDtypeStruct((rows, lt), jnp.float32),
        grid=grid,
        in_specs=[
            # Packed params: whole tiny array resident in SMEM, read as scalars.
            pl.BlockSpec(memory_space=pltpu.MemorySpace.SMEM),
            # Lane-dense batch tile.
            pl.BlockSpec((block_rows, lt), lambda i: (i, 0)),
        ],
        out_specs=pl.BlockSpec((block_rows, lt), lambda i: (i, 0)),
        compiler_params=pltpu.CompilerParams(
            # Independent batch tiles: shard across TensorCores on v7x,
            # neutral on v5e/v6e.
            dimension_semantics=("parallel",),
            # Covers in+out double-buffered 4 MiB fast-path blocks on v5e's
            # 16 MiB scoped default; well under v7x's 64 MiB physical VMEM.
            vmem_limit_bytes=32 * 1024 * 1024,
        ),
    )(params, x2)

    return out2.reshape(-1)[:B].reshape(B, OUTPUT_SIZE)


def init_params(key):
    """Deterministic init mimicking PyTorch nn.Linear default:
    U(-1/sqrt(fan_in), 1/sqrt(fan_in)) for both weight and bias."""
    k1, k2, k3, k4 = jax.random.split(key, 4)
    bound1 = 1.0 / (INPUT_SIZE ** 0.5)
    bound2 = 1.0 / (LAYER_SIZE ** 0.5)
    w1 = jax.random.uniform(k1, (LAYER_SIZE, INPUT_SIZE), jnp.float32, -bound1, bound1)
    b1 = jax.random.uniform(k2, (LAYER_SIZE,), jnp.float32, -bound1, bound1)
    w2 = jax.random.uniform(k3, (OUTPUT_SIZE, LAYER_SIZE), jnp.float32, -bound2, bound2)
    b2 = jax.random.uniform(k4, (OUTPUT_SIZE,), jnp.float32, -bound2, bound2)
    return w1, b1, w2, b2


if __name__ == "__main__":
    key = jax.random.PRNGKey(0)
    key_x, key_p = jax.random.split(key)
    w1, b1, w2, b2 = init_params(key_p)

    def reference(xx):
        return jnp.maximum(xx @ w1.T + b1, 0.0) @ w2.T + b2

    # Small batch: single (8, 128) block, single chunk.
    batch = 32
    x = jax.random.normal(key_x, (batch, INPUT_SIZE), jnp.float32)
    out = jax.block_until_ready(neural_network_forward(x, w1, b1, w2, b2))
    assert out.shape == (batch, OUTPUT_SIZE)
    assert jnp.allclose(out, reference(x), atol=1e-4, rtol=1e-4)

    # Slightly larger (still tiny, ~36 KiB): exercises padding and the
    # multi-chunk fori_loop path inside the single-block fast path.
    batch2 = 9000
    x2 = jax.random.normal(key_x, (batch2, INPUT_SIZE), jnp.float32)
    out2 = jax.block_until_ready(neural_network_forward(x2, w1, b1, w2, b2))
    assert out2.shape == (batch2, OUTPUT_SIZE)
    assert jnp.allclose(out2, reference(x2), atol=1e-4, rtol=1e-4)

    print("KERNEL_OK")
</pallas_src>

<mosaic_0001>
module attributes {stable_mosaic.version = 11 : i64} {
  func.func @mlp_kernel(%arg0: i32, %arg1: memref<64xf32, #tpu.memory_space<smem>>, %arg2: memref<8x128xf32, #tpu.memory_space<vmem>>, %arg3: memref<8x128xf32, #tpu.memory_space<vmem>>) attributes {dimension_semantics = [#tpu.dimension_semantics<parallel>], iteration_bounds = array<i64: 1>, scalar_prefetch = 0 : i64, scratch_operands = 0 : i64, tpu.core_type = #tpu.core_type<tc>, window_params = [{transform_indices = @transform_0, window_bounds = array<i64: 64>}, {transform_indices = @transform_1, window_bounds = array<i64: 8, 128>}, {transform_indices = @transform_2, window_bounds = array<i64: 8, 128>}]} {
    %c32 = arith.constant 32 : index
    %0 = memref.load %arg1[%c32] : memref<64xf32, #tpu.memory_space<smem>>
    %c33 = arith.constant 33 : index
    %1 = memref.load %arg1[%c33] : memref<64xf32, #tpu.memory_space<smem>>
    %c0 = arith.constant 0 : index
    %2 = memref.load %arg1[%c0] : memref<64xf32, #tpu.memory_space<smem>>
    %c1 = arith.constant 1 : index
    %3 = memref.load %arg1[%c1] : memref<64xf32, #tpu.memory_space<smem>>
    %c2 = arith.constant 2 : index
    %4 = memref.load %arg1[%c2] : memref<64xf32, #tpu.memory_space<smem>>
    %c3 = arith.constant 3 : index
    %5 = memref.load %arg1[%c3] : memref<64xf32, #tpu.memory_space<smem>>
    %c4 = arith.constant 4 : index
    %6 = memref.load %arg1[%c4] : memref<64xf32, #tpu.memory_space<smem>>
    %c5 = arith.constant 5 : index
    %7 = memref.load %arg1[%c5] : memref<64xf32, #tpu.memory_space<smem>>
    %c6 = arith.constant 6 : index
    %8 = memref.load %arg1[%c6] : memref<64xf32, #tpu.memory_space<smem>>
    %c7 = arith.constant 7 : index
    %9 = memref.load %arg1[%c7] : memref<64xf32, #tpu.memory_space<smem>>
    %c8 = arith.constant 8 : index
    %10 = memref.load %arg1[%c8] : memref<64xf32, #tpu.memory_space<smem>>
    %c9 = arith.constant 9 : index
    %11 = memref.load %arg1[%c9] : memref<64xf32, #tpu.memory_space<smem>>
    %c10 = arith.constant 10 : index
    %12 = memref.load %arg1[%c10] : memref<64xf32, #tpu.memory_space<smem>>
    %c11 = arith.constant 11 : index
    %13 = memref.load %arg1[%c11] : memref<64xf32, #tpu.memory_space<smem>>
    %c12 = arith.constant 12 : index
    %14 = memref.load %arg1[%c12] : memref<64xf32, #tpu.memory_space<smem>>
    %c13 = arith.constant 13 : index
    %15 = memref.load %arg1[%c13] : memref<64xf32, #tpu.memory_space<smem>>
    %c14 = arith.constant 14 : index
    %16 = memref.load %arg1[%c14] : memref<64xf32, #tpu.memory_space<smem>>
    %c16 = arith.constant 16 : index
    %17 = memref.load %arg1[%c16] : memref<64xf32, #tpu.memory_space<smem>>
    %c17 = arith.constant 17 : index
    %18 = memref.load %arg1[%c17] : memref<64xf32, #tpu.memory_space<smem>>
    %c18 = arith.constant 18 : index
    %19 = memref.load %arg1[%c18] : memref<64xf32, #tpu.memory_space<smem>>
    %c19 = arith.constant 19 : index
    %20 = memref.load %arg1[%c19] : memref<64xf32, #tpu.memory_space<smem>>
    %c20 = arith.constant 20 : index
    %21 = memref.load %arg1[%c20] : memref<64xf32, #tpu.memory_space<smem>>
    %c21 = arith.constant 21 : index
    %22 = memref.load %arg1[%c21] : memref<64xf32, #tpu.memory_space<smem>>
    %c22 = arith.constant 22 : index
    %23 = memref.load %arg1[%c22] : memref<64xf32, #tpu.memory_space<smem>>
    %c23 = arith.constant 23 : index
    %24 = memref.load %arg1[%c23] : memref<64xf32, #tpu.memory_space<smem>>
    %c24 = arith.constant 24 : index
    %25 = memref.load %arg1[%c24] : memref<64xf32, #tpu.memory_space<smem>>
    %c25 = arith.constant 25 : index
    %26 = memref.load %arg1[%c25] : memref<64xf32, #tpu.memory_space<smem>>
    %c26 = arith.constant 26 : index
    %27 = memref.load %arg1[%c26] : memref<64xf32, #tpu.memory_space<smem>>
    %c27 = arith.constant 27 : index
    %28 = memref.load %arg1[%c27] : memref<64xf32, #tpu.memory_space<smem>>
    %c28 = arith.constant 28 : index
    %29 = memref.load %arg1[%c28] : memref<64xf32, #tpu.memory_space<smem>>
    %c29 = arith.constant 29 : index
    %30 = memref.load %arg1[%c29] : memref<64xf32, #tpu.memory_space<smem>>
    %c30 = arith.constant 30 : index
    %31 = memref.load %arg1[%c30] : memref<64xf32, #tpu.memory_space<smem>>
    %c0_0 = arith.constant 0 : index
    %c0_1 = arith.constant 0 : index
    %32 = vector.load %arg2[%c0_0, %c0_1] : memref<8x128xf32, #tpu.memory_space<vmem>>, vector<8x128xf32>
    %33 = vector.broadcast %0 : f32 to vector<8x128xf32>
    %34 = arith.mulf %33, %32 : vector<8x128xf32>
    %35 = vector.broadcast %1 : f32 to vector<8x128xf32>
    %36 = arith.addf %34, %35 : vector<8x128xf32>
    %37 = vector.broadcast %17 : f32 to vector<8x128xf32>
    %38 = arith.addf %32, %37 : vector<8x128xf32>
    %39 = math.absf %38 : vector<8x128xf32>
    %40 = vector.broadcast %2 : f32 to vector<8x128xf32>
    %41 = arith.mulf %40, %39 : vector<8x128xf32>
    %42 = arith.addf %36, %41 : vector<8x128xf32>
    %43 = vector.broadcast %18 : f32 to vector<8x128xf32>
    %44 = arith.addf %32, %43 : vector<8x128xf32>
    %45 = math.absf %44 : vector<8x128xf32>
    %46 = vector.broadcast %3 : f32 to vector<8x128xf32>
    %47 = arith.mulf %46, %45 : vector<8x128xf32>
    %48 = arith.addf %42, %47 : vector<8x128xf32>
    %49 = vector.broadcast %19 : f32 to vector<8x128xf32>
    %50 = arith.addf %32, %49 : vector<8x128xf32>
    %51 = math.absf %50 : vector<8x128xf32>
    %52 = vector.broadcast %4 : f32 to vector<8x128xf32>
    %53 = arith.mulf %52, %51 : vector<8x128xf32>
    %54 = arith.addf %48, %53 : vector<8x128xf32>
    %55 = vector.broadcast %20 : f32 to vector<8x128xf32>
    %56 = arith.addf %32, %55 : vector<8x128xf32>
    %57 = math.absf %56 : vector<8x128xf32>
    %58 = vector.broadcast %5 : f32 to vector<8x128xf32>
    %59 = arith.mulf %58, %57 : vector<8x128xf32>
    %60 = arith.addf %54, %59 : vector<8x128xf32>
    %61 = vector.broadcast %21 : f32 to vector<8x128xf32>
    %62 = arith.addf %32, %61 : vector<8x128xf32>
    %63 = math.absf %62 : vector<8x128xf32>
    %64 = vector.broadcast %6 : f32 to vector<8x128xf32>
    %65 = arith.mulf %64, %63 : vector<8x128xf32>
    %66 = arith.addf %60, %65 : vector<8x128xf32>
    %67 = vector.broadcast %22 : f32 to vector<8x128xf32>
    %68 = arith.addf %32, %67 : vector<8x128xf32>
    %69 = math.absf %68 : vector<8x128xf32>
    %70 = vector.broadcast %7 : f32 to vector<8x128xf32>
    %71 = arith.mulf %70, %69 : vector<8x128xf32>
    %72 = arith.addf %66, %71 : vector<8x128xf32>
    %73 = vector.broadcast %23 : f32 to vector<8x128xf32>
    %74 = arith.addf %32, %73 : vector<8x128xf32>
    %75 = math.absf %74 : vector<8x128xf32>
    %76 = vector.broadcast %8 : f32 to vector<8x128xf32>
    %77 = arith.mulf %76, %75 : vector<8x128xf32>
    %78 = arith.addf %72, %77 : vector<8x128xf32>
    %79 = vector.broadcast %24 : f32 to vector<8x128xf32>
    %80 = arith.addf %32, %79 : vector<8x128xf32>
    %81 = math.absf %80 : vector<8x128xf32>
    %82 = vector.broadcast %9 : f32 to vector<8x128xf32>
    %83 = arith.mulf %82, %81 : vector<8x128xf32>
    %84 = arith.addf %78, %83 : vector<8x128xf32>
    %85 = vector.broadcast %25 : f32 to vector<8x128xf32>
    %86 = arith.addf %32, %85 : vector<8x128xf32>
    %87 = math.absf %86 : vector<8x128xf32>
    %88 = vector.broadcast %10 : f32 to vector<8x128xf32>
    %89 = arith.mulf %88, %87 : vector<8x128xf32>
    %90 = arith.addf %84, %89 : vector<8x128xf32>
    %91 = vector.broadcast %26 : f32 to vector<8x128xf32>
    %92 = arith.addf %32, %91 : vector<8x128xf32>
    %93 = math.absf %92 : vector<8x128xf32>
    %94 = vector.broadcast %11 : f32 to vector<8x128xf32>
    %95 = arith.mulf %94, %93 : vector<8x128xf32>
    %96 = arith.addf %90, %95 : vector<8x128xf32>
    %97 = vector.broadcast %27 : f32 to vector<8x128xf32>
    %98 = arith.addf %32, %97 : vector<8x128xf32>
    %99 = math.absf %98 : vector<8x128xf32>
    %100 = vector.broadcast %12 : f32 to vector<8x128xf32>
    %101 = arith.mulf %100, %99 : vector<8x128xf32>
    %102 = arith.addf %96, %101 : vector<8x128xf32>
    %103 = vector.broadcast %28 : f32 to vector<8x128xf32>
    %104 = arith.addf %32, %103 : vector<8x128xf32>
    %105 = math.absf %104 : vector<8x128xf32>
    %106 = vector.broadcast %13 : f32 to vector<8x128xf32>
    %107 = arith.mulf %106, %105 : vector<8x128xf32>
    %108 = arith.addf %102, %107 : vector<8x128xf32>
    %109 = vector.broadcast %29 : f32 to vector<8x128xf32>
    %110 = arith.addf %32, %109 : vector<8x128xf32>
    %111 = math.absf %110 : vector<8x128xf32>
    %112 = vector.broadcast %14 : f32 to vector<8x128xf32>
    %113 = arith.mulf %112, %111 : vector<8x128xf32>
    %114 = arith.addf %108, %113 : vector<8x128xf32>
    %115 = vector.broadcast %30 : f32 to vector<8x128xf32>
    %116 = arith.addf %32, %115 : vector<8x128xf32>
    %117 = math.absf %116 : vector<8x128xf32>
    %118 = vector.broadcast %15 : f32 to vector<8x128xf32>
    %119 = arith.mulf %118, %117 : vector<8x128xf32>
    %120 = arith.addf %114, %119 : vector<8x128xf32>
    %121 = vector.broadcast %31 : f32 to vector<8x128xf32>
    %122 = arith.addf %32, %121 : vector<8x128xf32>
    %123 = math.absf %122 : vector<8x128xf32>
    %124 = vector.broadcast %16 : f32 to vector<8x128xf32>
    %125 = arith.mulf %124, %123 : vector<8x128xf32>
    %126 = arith.addf %120, %125 : vector<8x128xf32>
    %c0_2 = arith.constant 0 : index
    %c0_3 = arith.constant 0 : index
    %127 = vector.load %arg3[%c0_2, %c0_3] : memref<8x128xf32, #tpu.memory_space<vmem>>, vector<8x128xf32>
    tpu.vector_store %arg3[%c0_2, %c0_3], %126 {strides = array<i32>} : memref<8x128xf32, #tpu.memory_space<vmem>>, vector<8x128xf32>,
    return
  }
  func.func @transform_0(%arg0: i32) -> i32 {
    %c0_i32 = arith.constant 0 : i32
    %c0_i32_0 = arith.constant 0 : i32
    return %c0_i32 : i32
  }
  func.func @transform_1(%arg0: i32) -> (i32, i32) {
    %c0_i32 = arith.constant 0 : i32
    %c0_i32_0 = arith.constant 0 : i32
    return %arg0, %c0_i32 : i32, i32
  }
  func.func @transform_2(%arg0: i32) -> (i32, i32) {
    %c0_i32 = arith.constant 0 : i32
    %c0_i32_0 = arith.constant 0 : i32
    return %arg0, %c0_i32 : i32, i32
  }
}

</mosaic_0001>

<llo_original>
// kernel: tpu_custom_call.1
$region0: #{tpu_custom_call.1}
  #allocation0 [shape = 'u32[]', space=smem, size = 0x4, offset = 0x4, fixed_abs, tag = 'smem constant byte address 0x4 - core index']
  #allocation1 [shape = 'u32[144,128]{1,0:T(1,128)}', space=vmem, size = 0x12000, scoped, tag = 'internal scratch']
  %s0 = inlined_call_operand.hbm [shape: f32[64], index: 0, kind: input, shape index: {}]
  %s1 = inlined_call_operand.hbm [shape: f32[8,128], index: 1, kind: input, shape index: {}]
  %s2 = inlined_call_operand.hbm [shape: f32[8,128], index: 2, kind: output, shape index: {}]
  %s3 = sld [smem:[#allocation0]]
  $region26: #{tpu_custom_call.1} parent=0
    _
  %s5 = ssub.s32 1, %s3
  %s6 = scalar_select 0, %s5, %s3
  $region1: #{tpu_custom_call.1} parent=0
    #allocation2 [shape = 'u8[512]{0}', space=smem, size = 0x200, scoped, tag = 'input window, operand 0, single buffered']
    #allocation3 [shape = 's32[1]{0}', space=sflag, size = 0x4, scoped, tag = 'scoped memory for tpu_custom_call.1']
    #allocation4 [shape = 's32[1]{0}', space=sflag, size = 0x4, scoped, tag = 'scoped memory for tpu_custom_call.1']
    #allocation5 [shape = 's32[1]{0}', space=sflag, size = 0x4, scoped, tag = 'scoped memory for tpu_custom_call.1']
    #allocation6 [shape = 'u8[4096]{0}', space=vmem, size = 0x1000, scoped, tag = 'input window, operand 1, single buffered']
    #allocation7 [shape = 'u8[4096]{0}', space=vmem, size = 0x1000, scoped, tag = 'output window, operand 0, single buffered']
    %7 = vsyncpa [#allocation5], 0
    %8 = vsyncpa [#allocation3], 0
    %9 = vsyncpa [#allocation4], 0
    // Predicated region
    $region2: #{tpu_custom_call.1} parent=1 // pred_check
      _
    $region3: #{tpu_custom_call.1} parent=1 // pred_check_branch
      %11 = sbr.rel (0) target = $region5
    $region4: #{tpu_custom_call.1} parent=1 // pred_region
      %s13 = ssub.s32 16, 16
      %14 = vsyncadd [#allocation5], %s13
      %17 = dma.hbm_to_smem %s0, 16, [#allocation2], [#allocation5]
    $region5: #{tpu_custom_call.1} parent=1 // pred_fallthru
      _
    // Predicated region
    $region6: #{tpu_custom_call.1} parent=1 // pred_check
      _
    $region7: #{tpu_custom_call.1} parent=1 // pred_check_branch
      %19 = sbr.rel (0) target = $region9
    $region8: #{tpu_custom_call.1} parent=1 // pred_region
      %s21 = ssub.s32 128, 128
      %22 = vsyncadd [#allocation3], %s21
      %s24 = sshll.u32 [#allocation6], 4
      %s25 = int_to_ptr.vmem [resolvable:$true] %s24
      %27 = dma.hbm_to_vmem [thread:$0]  %s1, 128, %s25, [#allocation3]
    $region9: #{tpu_custom_call.1} parent=1 // pred_fallthru
      _
    // Predicated region
    $region10: #{tpu_custom_call.1} parent=1 // pred_check
      _
    $region11: #{tpu_custom_call.1} parent=1 // pred_check_branch
      %29 = sbr.rel (0) target = $region13
    $region12: #{tpu_custom_call.1} parent=1 // pred_region
      %30 = dma.done [#allocation5], 16
    $region13: #{tpu_custom_call.1} parent=1 // pred_fallthru
      _
    // Predicated region
    $region14: #{tpu_custom_call.1} parent=1 // pred_check
      _
    $region15: #{tpu_custom_call.1} parent=1 // pred_check_branch
      %32 = sbr.rel (0) target = $region17
    $region16: #{tpu_custom_call.1} parent=1 // pred_region
      %33 = dma.done [#allocation3], 128
    $region17: #{tpu_custom_call.1} parent=1 // pred_fallthru
      _
    %34 = sfence
    %s35 = sld [smem:[#allocation2 + $0x20]]
    %s36 = sld [smem:[#allocation2 + $0x21]]
    %s37 = sld [smem:[#allocation2]]
    %s38 = sld [smem:[#allocation2 + $0x1]]
    %s39 = sld [smem:[#allocation2 + $0x2]]
    %s40 = sld [smem:[#allocation2 + $0x3]]
    %s41 = sld [smem:[#allocation2 + $0x4]]
    %s42 = sld [smem:[#allocation2 + $0x5]]
    %s43 = sld [smem:[#allocation2 + $0x6]]
    %s44 = sld [smem:[#allocation2 + $0x7]]
    %s45 = sld [smem:[#allocation2 + $0x8]]
    %s46 = sld [smem:[#allocation2 + $0x9]]
    %s47 = sld [smem:[#allocation2 + $0xa]]
    %s48 = sld [smem:[#allocation2 + $0xb]]
    %s49 = sld [smem:[#allocation2 + $0xc]]
    %s50 = sld [smem:[#allocation2 + $0xd]]
    %s51 = sld [smem:[#allocation2 + $0xe]]
    %s52 = sld [smem:[#allocation2 + $0x10]]
    %s53 = sld [smem:[#allocation2 + $0x11]]
    %s54 = sld [smem:[#allocation2 + $0x12]]
    %s55 = sld [smem:[#allocation2 + $0x13]]
    %s56 = sld [smem:[#allocation2 + $0x14]]
    %s57 = sld [smem:[#allocation2 + $0x15]]
    %s58 = sld [smem:[#allocation2 + $0x16]]
    %s59 = sld [smem:[#allocation2 + $0x17]]
    %s60 = sld [smem:[#allocation2 + $0x18]]
    %s61 = sld [smem:[#allocation2 + $0x19]]
    %s62 = sld [smem:[#allocation2 + $0x1a]]
    %s63 = sld [smem:[#allocation2 + $0x1b]]
    %s64 = sld [smem:[#allocation2 + $0x1c]]
    %s65 = sld [smem:[#allocation2 + $0x1d]]
    %s66 = sld [smem:[#allocation2 + $0x1e]]
    %v67 = vld [vmem:[#allocation6] sm:$0xff]
    %v68 = vstv %s35
    %v69 = vmul.f32 %v68, %v67
    %v70 = vstv %s36
    %v71 = vadd.f32 %v69, %v70
    %v72 = vstv %s52
    %v73 = vadd.f32 %v67, %v72
    %v74 = vand.u32 2147483647, %v73
    %v75 = vstv %s37
    %v76 = vmul.f32 %v75, %v74
    %v77 = vadd.f32 %v71, %v76
    %v78 = vstv %s53
    %v79 = vadd.f32 %v67, %v78
    %v80 = vand.u32 2147483647, %v79
    %v81 = vstv %s38
    %v82 = vmul.f32 %v81, %v80
    %v83 = vadd.f32 %v77, %v82
    %v84 = vstv %s54
    %v85 = vadd.f32 %v67, %v84
    %v86 = vand.u32 2147483647, %v85
    %v87 = vstv %s39
    %v88 = vmul.f32 %v87, %v86
    %v89 = vadd.f32 %v83, %v88
    %v90 = vstv %s55
    %v91 = vadd.f32 %v67, %v90
    %v92 = vand.u32 2147483647, %v91
    %v93 = vstv %s40
    %v94 = vmul.f32 %v93, %v92
    %v95 = vadd.f32 %v89, %v94
    %v96 = vstv %s56
    %v97 = vadd.f32 %v67, %v96
    %v98 = vand.u32 2147483647, %v97
    %v99 = vstv %s41
    %v100 = vmul.f32 %v99, %v98
    %v101 = vadd.f32 %v95, %v100
    %v102 = vstv %s57
    %v103 = vadd.f32 %v67, %v102
    %v104 = vand.u32 2147483647, %v103
    %v105 = vstv %s42
    %v106 = vmul.f32 %v105, %v104
    %v107 = vadd.f32 %v101, %v106
    %v108 = vstv %s58
    %v109 = vadd.f32 %v67, %v108
    %v110 = vand.u32 2147483647, %v109
    %v111 = vstv %s43
    %v112 = vmul.f32 %v111, %v110
    %v113 = vadd.f32 %v107, %v112
    %v114 = vstv %s59
    %v115 = vadd.f32 %v67, %v114
    %v116 = vand.u32 2147483647, %v115
    %v117 = vstv %s44
    %v118 = vmul.f32 %v117, %v116
    %v119 = vadd.f32 %v113, %v118
    %v120 = vstv %s60
    %v121 = vadd.f32 %v67, %v120
    %v122 = vand.u32 2147483647, %v121
    %v123 = vstv %s45
    %v124 = vmul.f32 %v123, %v122
    %v125 = vadd.f32 %v119, %v124
    %v126 = vstv %s61
    %v127 = vadd.f32 %v67, %v126
    %v128 = vand.u32 2147483647, %v127
    %v129 = vstv %s46
    %v130 = vmul.f32 %v129, %v128
    %v131 = vadd.f32 %v125, %v130
    %v132 = vstv %s62
    %v133 = vadd.f32 %v67, %v132
    %v134 = vand.u32 2147483647, %v133
    %v135 = vstv %s47
    %v136 = vmul.f32 %v135, %v134
    %v137 = vadd.f32 %v131, %v136
    %v138 = vstv %s63
    %v139 = vadd.f32 %v67, %v138
    %v140 = vand.u32 2147483647, %v139
    %v141 = vstv %s48
    %v142 = vmul.f32 %v141, %v140
    %v143 = vadd.f32 %v137, %v142
    %v144 = vstv %s64
    %v145 = vadd.f32 %v67, %v144
    %v146 = vand.u32 2147483647, %v145
    %v147 = vstv %s49
    %v148 = vmul.f32 %v147, %v146
    %v149 = vadd.f32 %v143, %v148
    %v150 = vstv %s65
    %v151 = vadd.f32 %v67, %v150
    %v152 = vand.u32 2147483647, %v151
    %v153 = vstv %s50
    %v154 = vmul.f32 %v153, %v152
    %v155 = vadd.f32 %v149, %v154
    %v156 = vstv %s66
    %v157 = vadd.f32 %v67, %v156
    %v158 = vand.u32 2147483647, %v157
    %v159 = vstv %s51
    %v160 = vmul.f32 %v159, %v158
    %v161 = vadd.f32 %v155, %v160
    %162 = vst [vmem:[#allocation7] sm:$0xff] %v161
    // Predicated region
    $region18: #{tpu_custom_call.1} parent=1 // pred_check
      _
    $region19: #{tpu_custom_call.1} parent=1 // pred_check_branch
      %164 = sbr.rel (0) target = $region21
    $region20: #{tpu_custom_call.1} parent=1 // pred_region
      %s166 = ssub.s32 128, 128
      %167 = vsyncadd [#allocation4], %s166
      %s169 = sshll.u32 [#allocation7], 4
      %s170 = int_to_ptr.vmem [resolvable:$true] %s169
      %172 = dma.vmem_to_hbm [thread:$0]  %s170, 128, %s2, [#allocation4]
    $region21: #{tpu_custom_call.1} parent=1 // pred_fallthru
      _
    // Predicated region
    $region22: #{tpu_custom_call.1} parent=1 // pred_check
      _
    $region23: #{tpu_custom_call.1} parent=1 // pred_check_branch
      %174 = sbr.rel (0) target = $region25
    $region24: #{tpu_custom_call.1} parent=1 // pred_region
      %175 = dma.done [#allocation4], 128
    $region25: #{tpu_custom_call.1} parent=1 // pred_fallthru
      _
    %176 = vsyncpa [#allocation3], 1
    %177 = vsyncpa [#allocation4], 1
    %178 = vsyncpa [#allocation5], 1

</llo_original>
